<compile_context>
chip_gen: v7x
topology: tpu7x:2x2x1
jax: 0.10.0
libtpu: 0.0.40
codegen_flags: <defaults>
</compile_context>

<pallas_src>
import jax
import jax.numpy as jnp
from jax.experimental import pallas as pl
from jax.experimental.pallas import tpu as pltpu


_LANE = 128      # lane-dense output width (n_classes padded up to this)
_NEG = -1e30     # pad-lane head bias: exp underflows to 0 in the softmax


def _round_up(n, m):
    return ((n + m - 1) // m) * m


def class_decoder_kernel(x_ref, we_ref, be_ref, wh_ref, bh_ref, out_ref):
    """Fused: encoder-linear -> flatten -> ReLU -> Linear -> LogSoftmax.

    x_ref:  (TB, F)      input batch tile (f32 or bf16)
    we_ref: (F, D)       encoder weight   (VMEM-resident across the grid)
    be_ref: (1, D)       encoder bias, f32
    wh_ref: (D, 128)     head weight, zero-padded on lanes >= n_classes
    bh_ref: (1, 128)     head bias, -1e30 on lanes >= n_classes
    out_ref:(TB, 128)    lane-dense log-probs; only [:, :n_classes] is real
    """
    # Synthetic encoder linear: (TB, F) @ (F, D), f32 accumulation on the MXU.
    enc = jnp.dot(x_ref[...], we_ref[...],
                  preferred_element_type=jnp.float32) + be_ref[...]

    # nn.Flatten(start_dim=1) is a no-op here (already (TB, D)), then nn.ReLU.
    h = jnp.maximum(enc, 0.0)

    # nn.Linear(D, 3) padded to a lane-dense 128-wide block.  Pad lanes carry
    # zero weights and a -1e30 bias, so they vanish from the softmax below.
    logits = jnp.dot(h, wh_ref[...],
                     preferred_element_type=jnp.float32) + bh_ref[...]

    # nn.LogSoftmax(dim=1), numerically stable (row-wise over 128 lanes;
    # pad lanes contribute exp(-1e30 - m) == 0 to the sum).
    m = jnp.max(logits, axis=1, keepdims=True)
    s = logits - m
    lse = jnp.log(jnp.sum(jnp.exp(s), axis=1, keepdims=True))
    out_ref[...] = s - lse


def class_decoder_forward(x, w_enc, b_enc, w_head, b_head, *,
                          block_b=256, compute_dtype=jnp.float32):
    """x: (B, H, W).  Returns log-probs (B, n_classes) float32."""
    B = x.shape[0]
    # unsqueeze(1) -> (B,1,H,W) NCHW, then flatten for the stand-in encoder.
    x_flat = x.reshape(B, -1).astype(compute_dtype)           # (B, C*H*W)
    F = x_flat.shape[1]
    D = w_enc.shape[1]
    n_cls = w_head.shape[1]

    # Lane-dense head parameters (pad n_cls -> 128; built once per call).
    w_head_p = jnp.zeros((D, _LANE), jnp.float32).at[:, :n_cls].set(
        w_head.astype(jnp.float32))
    b_head_p = jnp.full((1, _LANE), _NEG, jnp.float32).at[0, :n_cls].set(
        b_head.astype(jnp.float32))

    w_enc_c = w_enc.astype(compute_dtype)
    b_enc2 = b_enc.reshape(1, D).astype(jnp.float32)

    # Batch tiling: sublane-aligned tile; one grid axis over the batch.
    itemsize = jnp.dtype(compute_dtype).itemsize
    sub = {4: 8, 2: 16, 1: 32}.get(itemsize, 8)
    tb = min(block_b, _round_up(B, sub))
    tb = _round_up(max(tb, sub), sub)
    b_pad = _round_up(B, tb)
    if b_pad != B:
        x_flat = jnp.pad(x_flat, ((0, b_pad - B), (0, 0)))
    grid = (b_pad // tb,)

    cost = pl.CostEstimate(
        flops=2 * b_pad * F * D + 2 * b_pad * D * _LANE,
        transcendentals=b_pad * (_LANE + 1),
        bytes_accessed=(b_pad * F * itemsize            # x stream
                        + F * D * itemsize + D * 4      # encoder params
                        + (D + 1) * _LANE * 4           # padded head params
                        + b_pad * _LANE * 4),           # output slab
    )

    vmem = pltpu.MemorySpace.VMEM
    out_padded = pl.pallas_call(
        class_decoder_kernel,
        out_shape=jax.ShapeDtypeStruct((b_pad, _LANE), jnp.float32),
        grid=grid,
        in_specs=[
            pl.BlockSpec((tb, F), lambda i: (i, 0), memory_space=vmem),
            pl.BlockSpec((F, D), lambda i: (0, 0), memory_space=vmem),
            pl.BlockSpec((1, D), lambda i: (0, 0), memory_space=vmem),
            pl.BlockSpec((D, _LANE), lambda i: (0, 0), memory_space=vmem),
            pl.BlockSpec((1, _LANE), lambda i: (0, 0), memory_space=vmem),
        ],
        out_specs=pl.BlockSpec((tb, _LANE), lambda i: (i, 0),
                               memory_space=vmem),
        compiler_params=pltpu.CompilerParams(
            dimension_semantics=("parallel",)),
        cost_estimate=cost,
    )(x_flat, w_enc_c, b_enc2, w_head_p, b_head_p)

    return out_padded[:B, :n_cls]


if __name__ == "__main__":
    # Small shapes consistent with the module's forward:
    #   x: (B, H, W) = (2, 16, 16) -> unsqueeze(1) -> (2, 1, 16, 16) NCHW
    #   encoded_space_dim = 32, classes = 3
    B, H, W = 2, 16, 16
    C = 1            # the channel dim added by unsqueeze(1)
    D = 32           # encoder.encoded_space_dim
    NCLS = 3
    F = C * H * W    # flattened features for the stand-in encoder

    key = jax.random.PRNGKey(0)
    kx, kwe, kbe, kwh, kbh = jax.random.split(key, 5)

    x = jax.random.normal(kx, (B, H, W), dtype=jnp.float32)
    w_enc = jax.random.uniform(kwe, (F, D), jnp.float32,
                               minval=-1.0, maxval=1.0) / jnp.sqrt(F)
    b_enc = jax.random.uniform(kbe, (D,), jnp.float32,
                               minval=-1.0, maxval=1.0) / jnp.sqrt(F)
    w_head = jax.random.uniform(kwh, (D, NCLS), jnp.float32,
                                minval=-1.0, maxval=1.0) / jnp.sqrt(D)
    b_head = jax.random.uniform(kbh, (NCLS,), jnp.float32,
                                minval=-1.0, maxval=1.0) / jnp.sqrt(D)

    def ref_logp(xin, dt):
        xf = xin.reshape(xin.shape[0], -1).astype(dt)
        enc = jnp.dot(xf, w_enc.astype(dt),
                      preferred_element_type=jnp.float32) + b_enc
        h = jnp.maximum(enc, 0.0)
        logits = jnp.dot(h, w_head,
                         preferred_element_type=jnp.float32) + b_head
        return logits - jax.scipy.special.logsumexp(logits, axis=1,
                                                    keepdims=True)

    # 1) f32 path, tiny batch (single tile).
    out = jax.block_until_ready(
        class_decoder_forward(x, w_enc, b_enc, w_head, b_head))
    ref = ref_logp(x, jnp.float32)
    assert out.shape == (B, NCLS)
    assert jnp.allclose(out, ref, atol=1e-4), "f32 mismatch vs JAX reference"
    assert jnp.allclose(jnp.exp(out).sum(axis=1), 1.0, atol=1e-4)

    # 2) f32 path, multi-tile batch grid (exercises weight-resident pipelining).
    B2 = 64
    x2 = jax.random.normal(jax.random.PRNGKey(1), (B2, H, W),
                           dtype=jnp.float32)
    out2 = jax.block_until_ready(
        class_decoder_forward(x2, w_enc, b_enc, w_head, b_head, block_b=16))
    ref2 = ref_logp(x2, jnp.float32)
    assert out2.shape == (B2, NCLS)
    assert jnp.allclose(out2, ref2, atol=1e-4), "grid mismatch vs reference"
    assert jnp.allclose(jnp.exp(out2).sum(axis=1), 1.0, atol=1e-4)

    # 3) bf16 input / encoder-weight path (v6e/v7x HBM-bandwidth optimization;
    #    MXU accumulation stays f32).
    out_bf16 = jax.block_until_ready(
        class_decoder_forward(x, w_enc, b_enc, w_head, b_head,
                              compute_dtype=jnp.bfloat16))
    ref_bf16 = ref_logp(x, jnp.bfloat16)
    assert out_bf16.shape == (B, NCLS)
    assert jnp.allclose(out_bf16, ref_bf16, atol=5e-2), "bf16 path mismatch"
    assert jnp.allclose(jnp.exp(out_bf16).sum(axis=1), 1.0, atol=1e-2)

    print("KERNEL_OK")
</pallas_src>

<mosaic_0001>
module attributes {stable_mosaic.version = 11 : i64} {
  func.func @class_decoder_kernel(%arg0: i32, %arg1: memref<8x256xf32, #tpu.memory_space<vmem>>, %arg2: memref<256x32xf32, #tpu.memory_space<vmem>>, %arg3: memref<1x32xf32, #tpu.memory_space<vmem>>, %arg4: memref<32x128xf32, #tpu.memory_space<vmem>>, %arg5: memref<1x128xf32, #tpu.memory_space<vmem>>, %arg6: memref<8x128xf32, #tpu.memory_space<vmem>>) attributes {dimension_semantics = [#tpu.dimension_semantics<parallel>], iteration_bounds = array<i64: 1>, scalar_prefetch = 0 : i64, scratch_operands = 0 : i64, tpu.core_type = #tpu.core_type<tc>, window_params = [{transform_indices = @transform_0, window_bounds = array<i64: 8, 256>}, {pipeline_mode = #tpu.pipeline_mode<synchronous>, transform_indices = @transform_1, window_bounds = array<i64: 256, 32>}, {pipeline_mode = #tpu.pipeline_mode<synchronous>, transform_indices = @transform_2, window_bounds = array<i64: 1, 32>}, {pipeline_mode = #tpu.pipeline_mode<synchronous>, transform_indices = @transform_3, window_bounds = array<i64: 32, 128>}, {pipeline_mode = #tpu.pipeline_mode<synchronous>, transform_indices = @transform_4, window_bounds = array<i64: 1, 128>}, {transform_indices = @transform_5, window_bounds = array<i64: 8, 128>}]} {
    %c0 = arith.constant 0 : index
    %c0_0 = arith.constant 0 : index
    %0 = vector.load %arg1[%c0, %c0_0] : memref<8x256xf32, #tpu.memory_space<vmem>>, vector<8x256xf32>
    %c0_1 = arith.constant 0 : index
    %c0_2 = arith.constant 0 : index
    %1 = vector.load %arg2[%c0_1, %c0_2] : memref<256x32xf32, #tpu.memory_space<vmem>>, vector<256x32xf32>
    %cst = arith.constant dense<0.000000e+00> : vector<8x32xf32>
    %2 = tpu.matmul %0, %1, %cst {dimension_numbers = #tpu.dot_dimension_numbers<[1], [0], [0], [1], [0, 0, 1, 1], [], []>} : vector<8x256xf32>, vector<256x32xf32>, vector<8x32xf32> -> vector<8x32xf32>
    %c0_3 = arith.constant 0 : index
    %c0_4 = arith.constant 0 : index
    %3 = vector.load %arg3[%c0_3, %c0_4] : memref<1x32xf32, #tpu.memory_space<vmem>>, vector<1x32xf32>
    %4 = vector.broadcast %3 : vector<1x32xf32> to vector<8x32xf32>
    %5 = arith.addf %2, %4 : vector<8x32xf32>
    %cst_5 = arith.constant 0.000000e+00 : f32
    %6 = vector.broadcast %cst_5 : f32 to vector<8x32xf32>
    %7 = arith.maximumf %5, %6 : vector<8x32xf32>
    %c0_6 = arith.constant 0 : index
    %c0_7 = arith.constant 0 : index
    %8 = vector.load %arg4[%c0_6, %c0_7] : memref<32x128xf32, #tpu.memory_space<vmem>>, vector<32x128xf32>
    %cst_8 = arith.constant dense<0.000000e+00> : vector<8x128xf32>
    %9 = tpu.matmul %7, %8, %cst_8 {dimension_numbers = #tpu.dot_dimension_numbers<[1], [0], [0], [1], [0, 0, 1, 1], [], []>} : vector<8x32xf32>, vector<32x128xf32>, vector<8x128xf32> -> vector<8x128xf32>
    %c0_9 = arith.constant 0 : index
    %c0_10 = arith.constant 0 : index
    %10 = vector.load %arg5[%c0_9, %c0_10] : memref<1x128xf32, #tpu.memory_space<vmem>>, vector<1x128xf32>
    %11 = vector.broadcast %10 : vector<1x128xf32> to vector<8x128xf32>
    %12 = arith.addf %9, %11 : vector<8x128xf32>
    %cst_11 = arith.constant dense<0xFF800000> : vector<8xf32>
    %13 = vector.multi_reduction <maximumf>, %12, %cst_11 [1] : vector<8x128xf32> to vector<8xf32>
    %14 = vector.shape_cast %13 : vector<8xf32> to vector<8x1xf32>
    %15 = vector.broadcast %14 : vector<8x1xf32> to vector<8x128xf32>
    %16 = arith.subf %12, %15 : vector<8x128xf32>
    %17 = math.exp %16 : vector<8x128xf32>
    %cst_12 = arith.constant dense<0.000000e+00> : vector<8xf32>
    %18 = vector.multi_reduction <add>, %17, %cst_12 [1] : vector<8x128xf32> to vector<8xf32>
    %19 = vector.shape_cast %18 : vector<8xf32> to vector<8x1xf32>
    %20 = math.log %19 : vector<8x1xf32>
    %21 = vector.broadcast %20 : vector<8x1xf32> to vector<8x128xf32>
    %22 = arith.subf %16, %21 : vector<8x128xf32>
    %c0_13 = arith.constant 0 : index
    %c0_14 = arith.constant 0 : index
    %23 = vector.load %arg6[%c0_13, %c0_14] : memref<8x128xf32, #tpu.memory_space<vmem>>, vector<8x128xf32>
    tpu.vector_store %arg6[%c0_13, %c0_14], %22 {strides = array<i32>} : memref<8x128xf32, #tpu.memory_space<vmem>>, vector<8x128xf32>,
    return
  }
  func.func @transform_0(%arg0: i32) -> (i32, i32) {
    %c0_i32 = arith.constant 0 : i32
    %c0_i32_0 = arith.constant 0 : i32
    return %arg0, %c0_i32 : i32, i32
  }
  func.func @transform_1(%arg0: i32) -> (i32, i32) {
    %c0_i32 = arith.constant 0 : i32
    %c0_i32_0 = arith.constant 0 : i32
    %c0_i32_1 = arith.constant 0 : i32
    return %c0_i32, %c0_i32_0 : i32, i32
  }
  func.func @transform_2(%arg0: i32) -> (i32, i32) {
    %c0_i32 = arith.constant 0 : i32
    %c0_i32_0 = arith.constant 0 : i32
    %c0_i32_1 = arith.constant 0 : i32
    return %c0_i32, %c0_i32_0 : i32, i32
  }
  func.func @transform_3(%arg0: i32) -> (i32, i32) {
    %c0_i32 = arith.constant 0 : i32
    %c0_i32_0 = arith.constant 0 : i32
    %c0_i32_1 = arith.constant 0 : i32
    return %c0_i32, %c0_i32_0 : i32, i32
  }
  func.func @transform_4(%arg0: i32) -> (i32, i32) {
    %c0_i32 = arith.constant 0 : i32
    %c0_i32_0 = arith.constant 0 : i32
    %c0_i32_1 = arith.constant 0 : i32
    return %c0_i32, %c0_i32_0 : i32, i32
  }
  func.func @transform_5(%arg0: i32) -> (i32, i32) {
    %c0_i32 = arith.constant 0 : i32
    %c0_i32_0 = arith.constant 0 : i32
    return %arg0, %c0_i32 : i32, i32
  }
}

</mosaic_0001>

<llo_original>
// kernel: tpu_custom_call.1
$region0: #{tpu_custom_call.1}
  #allocation0 [shape = 'u32[]', space=smem, size = 0x4, offset = 0x4, fixed_abs, tag = 'smem constant byte address 0x4 - core index']
  #allocation1 [shape = 'u32[144,128]{1,0:T(1,128)}', space=vmem, size = 0x12000, scoped, tag = 'internal scratch']
  %s0 = inlined_call_operand.vmem [shape: f32[8,256], index: 0, kind: input, shape index: {}]
  %s1 = inlined_call_operand.vmem [shape: f32[256,32], index: 1, kind: input, shape index: {}]
  %s2 = inlined_call_operand.vmem [shape: f32[1,32], index: 2, kind: input, shape index: {}]
  %s3 = inlined_call_operand.vmem [shape: f32[32,128], index: 3, kind: input, shape index: {}]
  %s4 = inlined_call_operand.vmem [shape: f32[1,128], index: 4, kind: input, shape index: {}]
  %s5 = inlined_call_operand.hbm [shape: f32[8,128], index: 5, kind: output, shape index: {}]
  %s6 = sld [smem:[#allocation0]]
  $region30: #{tpu_custom_call.1} parent=0
    _
  %s8 = ssub.s32 1, %s6
  %s9 = scalar_select 0, %s8, %s6
  $region1: #{tpu_custom_call.1} parent=0
    #allocation2 [shape = 'u8[4096]{0}', space=vmem, size = 0x1000, scoped, tag = 'output window, operand 0, single buffered']
    #allocation3 [shape = 's32[1]{0}', space=sflag, size = 0x4, scoped, tag = 'scoped memory for tpu_custom_call.1']
    %10 = vsyncpa [#allocation3], 0
    // Predicated region
    $region2: #{tpu_custom_call.1} parent=1 // pred_check
      _
    $region3: #{tpu_custom_call.1} parent=1 // pred_check_branch
      %12 = sbr.rel (0) target = $region5
    $region4: #{tpu_custom_call.1} parent=1 // pred_region
      _
    $region5: #{tpu_custom_call.1} parent=1 // pred_fallthru
      _
    // Predicated region
    $region6: #{tpu_custom_call.1} parent=1 // pred_check
      _
    $region7: #{tpu_custom_call.1} parent=1 // pred_check_branch
      %14 = sbr.rel (0) target = $region9
    $region8: #{tpu_custom_call.1} parent=1 // pred_region
      _
    $region9: #{tpu_custom_call.1} parent=1 // pred_fallthru
      _
    // Predicated region
    $region10: #{tpu_custom_call.1} parent=1 // pred_check
      _
    $region11: #{tpu_custom_call.1} parent=1 // pred_check_branch
      %16 = sbr.rel (0) target = $region13
    $region12: #{tpu_custom_call.1} parent=1 // pred_region
      _
    $region13: #{tpu_custom_call.1} parent=1 // pred_fallthru
      _
    // Predicated region
    $region14: #{tpu_custom_call.1} parent=1 // pred_check
      _
    $region15: #{tpu_custom_call.1} parent=1 // pred_check_branch
      %18 = sbr.rel (0) target = $region17
    $region16: #{tpu_custom_call.1} parent=1 // pred_region
      _
    $region17: #{tpu_custom_call.1} parent=1 // pred_fallthru
      _
    // Predicated region
    $region18: #{tpu_custom_call.1} parent=1 // pred_check
      _
    $region19: #{tpu_custom_call.1} parent=1 // pred_check_branch
      %20 = sbr.rel (0) target = $region21
    $region20: #{tpu_custom_call.1} parent=1 // pred_region
      _
    $region21: #{tpu_custom_call.1} parent=1 // pred_fallthru
      _
    %v21 = vld [vmem:[%s0] sm:$0xff]
    %v22 = vld [vmem:[%s0 + $0x8] sm:$0xff]
    %v23 = vld [vmem:[%s1] sm:$0xff]
    %v24 = vld [vmem:[%s1 + $0x8] sm:$0xff]
    %v25 = vld [vmem:[%s1 + $0x10] sm:$0xff]
    %v26 = vld [vmem:[%s1 + $0x18] sm:$0xff]
    %v27 = vld [vmem:[%s1 + $0x20] sm:$0xff]
    %v28 = vld [vmem:[%s1 + $0x28] sm:$0xff]
    %v29 = vld [vmem:[%s1 + $0x30] sm:$0xff]
    %v30 = vld [vmem:[%s1 + $0x38] sm:$0xff]
    %v31 = vld [vmem:[%s1 + $0x40] sm:$0xff]
    %v32 = vld [vmem:[%s1 + $0x48] sm:$0xff]
    %v33 = vld [vmem:[%s1 + $0x50] sm:$0xff]
    %v34 = vld [vmem:[%s1 + $0x58] sm:$0xff]
    %v35 = vld [vmem:[%s1 + $0x60] sm:$0xff]
    %v36 = vld [vmem:[%s1 + $0x68] sm:$0xff]
    %v37 = vld [vmem:[%s1 + $0x70] sm:$0xff]
    %v38 = vld [vmem:[%s1 + $0x78] sm:$0xff]
    %v39 = vld [vmem:[%s1 + $0x80] sm:$0xff]
    %v40 = vld [vmem:[%s1 + $0x88] sm:$0xff]
    %v41 = vld [vmem:[%s1 + $0x90] sm:$0xff]
    %v42 = vld [vmem:[%s1 + $0x98] sm:$0xff]
    %v43 = vld [vmem:[%s1 + $0xa0] sm:$0xff]
    %v44 = vld [vmem:[%s1 + $0xa8] sm:$0xff]
    %v45 = vld [vmem:[%s1 + $0xb0] sm:$0xff]
    %v46 = vld [vmem:[%s1 + $0xb8] sm:$0xff]
    %v47 = vld [vmem:[%s1 + $0xc0] sm:$0xff]
    %v48 = vld [vmem:[%s1 + $0xc8] sm:$0xff]
    %v49 = vld [vmem:[%s1 + $0xd0] sm:$0xff]
    %v50 = vld [vmem:[%s1 + $0xd8] sm:$0xff]
    %v51 = vld [vmem:[%s1 + $0xe0] sm:$0xff]
    %v52 = vld [vmem:[%s1 + $0xe8] sm:$0xff]
    %v53 = vld [vmem:[%s1 + $0xf0] sm:$0xff]
    %v54 = vld [vmem:[%s1 + $0xf8] sm:$0xff]
    %v55 = vld [vmem:[%s2] sm:$0x1]
    %v57 = vlaneseq
    %v58 = vshrl.u32 %v57, 7
    %v59 = vsub.s32 0, %v58
    %v60 = vrot.slane %v55, %v59
    %62 = vmatprep.subr.mxu0 0.0
    %63 = vmatpush1.msra.mxu0 %v23
    %64 = vmatprep.subr.mxu0 0.0
    %65 = vmatpush1.msra.mxu0 %v24
    %66 = vmatprep.subr.mxu0 0.0
    %67 = vmatpush1.msra.mxu0 %v25
    %68 = vmatprep.subr.mxu0 0.0
    %69 = vmatpush1.msra.mxu0 %v26
    %70 = vmatprep.subr.mxu0 0.0
    %71 = vmatpush1.msra.mxu0 %v27
    %72 = vmatprep.subr.mxu0 0.0
    %73 = vmatpush1.msra.mxu0 %v28
    %74 = vmatprep.subr.mxu0 0.0
    %75 = vmatpush1.msra.mxu0 %v29
    %76 = vmatprep.subr.mxu0 0.0
    %77 = vmatpush1.msra.mxu0 %v30
    %78 = vmatprep.subr.mxu0 0.0
    %79 = vmatpush1.msra.mxu0 %v31
    %80 = vmatprep.subr.mxu0 0.0
    %81 = vmatpush1.msra.mxu0 %v32
    %82 = vmatprep.subr.mxu0 0.0
    %83 = vmatpush1.msra.mxu0 %v33
    %84 = vmatprep.subr.mxu0 0.0
    %85 = vmatpush1.msra.mxu0 %v34
    %86 = vmatprep.subr.mxu0 0.0
    %87 = vmatpush1.msra.mxu0 %v35
    %88 = vmatprep.subr.mxu0 0.0
    %89 = vmatpush1.msra.mxu0 %v36
    %90 = vmatprep.subr.mxu0 0.0
    %91 = vmatpush1.msra.mxu0 %v37
    %92 = vmatprep.subr.mxu0 0.0
    %93 = vmatpush1.msra.mxu0 %v38
    %94 = vmatprep.subr.mxu0 0.0
    %95 = vmatpush1.msra.mxu0 %v39
    %96 = vmatprep.subr.mxu0 0.0
    %97 = vmatpush1.msra.mxu0 %v40
    %98 = vmatprep.subr.mxu0 0.0
    %99 = vmatpush1.msra.mxu0 %v41
    %100 = vmatprep.subr.mxu0 0.0
    %101 = vmatpush1.msra.mxu0 %v42
    %102 = vmatprep.subr.mxu0 0.0
    %103 = vmatpush1.msra.mxu0 %v43
    %104 = vmatprep.subr.mxu0 0.0
    %105 = vmatpush1.msra.mxu0 %v44
    %106 = vmatprep.subr.mxu0 0.0
    %107 = vmatpush1.msra.mxu0 %v45
    %108 = vmatprep.subr.mxu0 0.0
    %109 = vmatpush1.msra.mxu0 %v46
    %110 = vmatprep.subr.mxu0 0.0
    %111 = vmatpush1.msra.mxu0 %v47
    %112 = vmatprep.subr.mxu0 0.0
    %113 = vmatpush1.msra.mxu0 %v48
    %114 = vmatprep.subr.mxu0 0.0
    %115 = vmatpush1.msra.mxu0 %v49
    %116 = vmatprep.subr.mxu0 0.0
    %117 = vmatpush1.msra.mxu0 %v50
    %118 = vmatprep.subr.mxu0 0.0
    %119 = vmatpush1.msra.mxu0 %v51
    %120 = vmatprep.subr.mxu0 0.0
    %121 = vmatpush1.msra.mxu0 %v52
    %122 = vmatprep.subr.mxu0 0.0
    %123 = vmatpush1.msra.mxu0 %v53
    %124 = vmatprep.subr.mxu0 0.0
    %125 = vmatpush1.msra.mxu0 %v54
    %126 = vmatprep.mubr.f32.mxu0 %v22
    %127 = vmatmul.mubr.f32.gmra.mrb[0].mxu0 %v21
    %v128 = vpop.f32.mrb[0].mxu0
    %v129 = vadd.f32 %v60, %v128
    %v130 = vpop.f32.mrb[0].mxu0
    %131 = vdwg.mxu0
    %v132 = vmax.f32 %v129, 0.0
    %v133 = vld [vmem:[%s3] sm:$0xff]
    %v134 = vld [vmem:[%s3 + $0x8] sm:$0xff]
    %v135 = vld [vmem:[%s3 + $0x10] sm:$0xff]
    %v136 = vld [vmem:[%s3 + $0x18] sm:$0xff]
    %v137 = vld [vmem:[%s4] sm:$0x1]
    %v139 = vlaneseq
    %v140 = vshrl.u32 %v139, 7
    %v141 = vsub.s32 0, %v140
    %v142 = vrot.slane %v137, %v141
    %vm144 = vcmask 261120
    %v146 = vsel %vm144, %v132, 0
    %148 = vmatprep.subr.mxu0 0.0
    %149 = vmatpush1.msra.mxu0 %v133
    %150 = vmatprep.subr.mxu0 0.0
    %151 = vmatpush1.msra.mxu0 %v134
    %152 = vmatprep.subr.mxu0 0.0
    %153 = vmatpush1.msra.mxu0 %v135
    %154 = vmatprep.subr.mxu0 0.0
    %155 = vmatpush1.msra.mxu0 %v136
    %156 = vmatprep.subr.mxu0 0.0
    %157 = vmatpush1.msra.mxu0 0.0
    %158 = vmatprep.subr.mxu0 0.0
    %159 = vmatpush1.msra.mxu0 0.0
    %160 = vmatprep.subr.mxu0 0.0
    %161 = vmatpush1.msra.mxu0 0.0
    %162 = vmatprep.subr.mxu0 0.0
    %163 = vmatpush1.msra.mxu0 0.0
    %164 = vmatprep.subr.mxu0 0.0
    %165 = vmatpush1.msra.mxu0 0.0
    %166 = vmatprep.subr.mxu0 0.0
    %167 = vmatpush1.msra.mxu0 0.0
    %168 = vmatprep.subr.mxu0 0.0
    %169 = vmatpush1.msra.mxu0 0.0
    %170 = vmatprep.subr.mxu0 0.0
    %171 = vmatpush1.msra.mxu0 0.0
    %172 = vmatprep.subr.mxu0 0.0
    %173 = vmatpush1.msra.mxu0 0.0
    %174 = vmatprep.subr.mxu0 0.0
    %175 = vmatpush1.msra.mxu0 0.0
    %176 = vmatprep.subr.mxu0 0.0
    %177 = vmatpush1.msra.mxu0 0.0
    %178 = vmatprep.subr.mxu0 0.0
    %179 = vmatpush1.msra.mxu0 0.0
    %180 = vmatprep.subr.mxu0 0.0
    %181 = vmatpush1.msra.mxu0 0.0
    %182 = vmatprep.subr.mxu0 0.0
    %183 = vmatpush1.msra.mxu0 0.0
    %184 = vmatprep.subr.mxu0 0.0
    %185 = vmatpush1.msra.mxu0 0.0
    %186 = vmatprep.subr.mxu0 0.0
    %187 = vmatpush1.msra.mxu0 0.0
    %188 = vmatprep.subr.mxu0 0.0
    %189 = vmatpush1.msra.mxu0 0.0
    %190 = vmatprep.subr.mxu0 0.0
    %191 = vmatpush1.msra.mxu0 0.0
    %192 = vmatprep.subr.mxu0 0.0
    %193 = vmatpush1.msra.mxu0 0.0
    %194 = vmatprep.subr.mxu0 0.0
    %195 = vmatpush1.msra.mxu0 0.0
    %196 = vmatprep.subr.mxu0 0.0
    %197 = vmatpush1.msra.mxu0 0.0
    %198 = vmatprep.subr.mxu0 0.0
    %199 = vmatpush1.msra.mxu0 0.0
    %200 = vmatprep.subr.mxu0 0.0
    %201 = vmatpush1.msra.mxu0 0.0
    %202 = vmatprep.subr.mxu0 0.0
    %203 = vmatpush1.msra.mxu0 0.0
    %204 = vmatprep.subr.mxu0 0.0
    %205 = vmatpush1.msra.mxu0 0.0
    %206 = vmatprep.subr.mxu0 0.0
    %207 = vmatpush1.msra.mxu0 0.0
    %208 = vmatprep.subr.mxu0 0.0
    %209 = vmatpush1.msra.mxu0 0.0
    %210 = vmatprep.subr.mxu0 0.0
    %211 = vmatpush1.msra.mxu0 0.0
    %212 = vmatprep.mubr.f32.mxu0 0.0
    %213 = vmatmul.mubr.f32.gmra.mrb[0].mxu0 %v146
    %v214 = vpop.f32.mrb[0].mxu0
    %v215 = vadd.f32 %v142, %v214
    %v216 = vpop.f32.mrb[0].mxu0
    %217 = vdwg.mxu0
    %218 = vmax.xlane.f32.xlu0 %v215
    %v219 = vpop.xlane.xlu0 %218
    %v220 = vsub.f32 %v215, %v219
    %v221 = vmul.f32 %v220, 1.442695
    %v222 = vpow.pop %v221
    %223 = vadd.xlane.f32.xlu0 %v222
    %v224 = vpop.xlane.xlu0 %223
    %v225 = vlog2.pop %v224
    %v226 = vmul.f32 %v225, 0.6931472
    %v227 = vsub.f32 %v220, %v226
    %228 = vst [vmem:[#allocation2] sm:$0xff] %v227
    // Predicated region
    $region22: #{tpu_custom_call.1} parent=1 // pred_check
      _
    $region23: #{tpu_custom_call.1} parent=1 // pred_check_branch
      %230 = sbr.rel (0) target = $region25
    $region24: #{tpu_custom_call.1} parent=1 // pred_region
      %s232 = ssub.s32 128, 128
      %233 = vsyncadd [#allocation3], %s232
      %s235 = sshll.u32 [#allocation2], 4
      %s236 = int_to_ptr.vmem [resolvable:$true] %s235
      %238 = dma.vmem_to_hbm [thread:$0]  %s236, 128, %s5, [#allocation3]
    $region25: #{tpu_custom_call.1} parent=1 // pred_fallthru
      _
    // Predicated region
    $region26: #{tpu_custom_call.1} parent=1 // pred_check
      _
    $region27: #{tpu_custom_call.1} parent=1 // pred_check_branch
      %240 = sbr.rel (0) target = $region29
    $region28: #{tpu_custom_call.1} parent=1 // pred_region
      %241 = dma.done [#allocation3], 128
    $region29: #{tpu_custom_call.1} parent=1 // pred_fallthru
      _
    %242 = vsyncpa [#allocation3], 1

</llo_original>
